<compile_context>
chip_gen: v7x
topology: tpu7x:2x2x1
jax: 0.10.0
libtpu: 0.0.40
codegen_flags: <defaults>
</compile_context>

<pallas_src>
import jax
import jax.numpy as jnp
import numpy as np
from jax.experimental import pallas as pl
from jax.experimental.pallas import tpu as pltpu


def _gemm_bn_relu_kernel(p_ref, w_ref, s_ref, b_ref, o_ref):
    # p_ref : (K, TN)      im2col patch columns for this (batch, tile)
    # w_ref : (C_out, K)   conv weight flattened to GEMM layout
    # s_ref : (C_out, 1)   folded BN scale   (gamma / sqrt(var + eps))
    # b_ref : (C_out, 1)   folded BN bias    (beta + (conv_b - mean) * scale)
    # o_ref : (C_out, TN)  output tile (lane-dense along TN)
    acc = jnp.dot(w_ref[...], p_ref[...], preferred_element_type=jnp.float32)
    y = acc * s_ref[...] + b_ref[...]
    o_ref[...] = jnp.maximum(y, 0.0).astype(o_ref.dtype)


def _pick_tile(npix, k, c_out, budget_bytes=16 * 1024 * 1024):
    """Largest lane-aligned column tile whose (double-buffered) blocks fit a
    conservative VMEM budget — safe on v5e/v6e (128 MiB) and v7x (64 MiB/TC)."""
    def tile_bytes(tn):
        # double-buffered patches + output blocks, plus resident weights/affine
        return 2 * 4 * tn * (k + c_out) + 4 * c_out * (k + 2)

    if tile_bytes(npix) <= budget_bytes:
        return npix
    for cand in (8192, 4096, 2048, 1024, 512, 256, 128):
        if npix % cand == 0 and tile_bytes(cand) <= budget_bytes:
            return cand
    # TODO(synk): remainder handling for huge, non-128-divisible Npix.
    return npix


def conv_bn_relu_forward(x, w, b, gamma, beta, running_mean, running_var,
                         *, stride=1, padding=0, eps=1e-5):
    B, C_in, H, W = x.shape
    C_out, C_in_w, KH, KW = w.shape
    assert C_in == C_in_w

    x = x.astype(jnp.float32)

    # ---- spatial zero-pad + im2col (XLA glue, no FLOPs) ----
    xp = jnp.pad(x, ((0, 0), (0, 0), (padding, padding), (padding, padding)))
    Hp, Wp = H + 2 * padding, W + 2 * padding
    Ho = (Hp - KH) // stride + 1
    Wo = (Wp - KW) // stride + 1
    Npix = Ho * Wo
    K = C_in * KH * KW

    taps = []
    for kh in range(KH):
        for kw in range(KW):
            taps.append(xp[:, :,
                           kh:kh + (Ho - 1) * stride + 1:stride,
                           kw:kw + (Wo - 1) * stride + 1:stride])
    patches = jnp.stack(taps, axis=1)            # (B, KH*KW, C_in, Ho, Wo)
    patches = patches.reshape(B, K, Npix)        # K index = (kh*KW+kw)*C_in + ci

    # matching weight layout: w2[co, (kh*KW+kw)*C_in + ci] = w[co, ci, kh, kw]
    w2 = jnp.transpose(w, (0, 2, 3, 1)).reshape(C_out, K).astype(jnp.float32)

    # ---- fold conv bias + BatchNorm (inference stats) into one affine ----
    scale = (gamma / jnp.sqrt(running_var + eps)).astype(jnp.float32)
    bias = (beta + (b - running_mean) * scale).astype(jnp.float32)
    scale2 = scale.reshape(C_out, 1)
    bias2 = bias.reshape(C_out, 1)

    TN = _pick_tile(Npix, K, C_out)
    grid = (B, Npix // TN)

    out2d = pl.pallas_call(
        _gemm_bn_relu_kernel,
        out_shape=jax.ShapeDtypeStruct((B, C_out, Npix), jnp.float32),
        grid=grid,
        in_specs=[
            pl.BlockSpec((None, K, TN), lambda bi, j: (bi, 0, j)),
            pl.BlockSpec((C_out, K), lambda bi, j: (0, 0)),
            pl.BlockSpec((C_out, 1), lambda bi, j: (0, 0)),
            pl.BlockSpec((C_out, 1), lambda bi, j: (0, 0)),
        ],
        out_specs=pl.BlockSpec((None, C_out, TN), lambda bi, j: (bi, 0, j)),
        compiler_params=pltpu.CompilerParams(
            dimension_semantics=("parallel", "parallel"),
            vmem_limit_bytes=48 * 1024 * 1024),
        cost_estimate=pl.CostEstimate(
            flops=2 * B * C_out * K * Npix,
            transcendentals=0,
            bytes_accessed=4 * (B * K * Npix + C_out * K
                                + B * C_out * Npix + 2 * C_out)),
    )(patches, w2, scale2, bias2)

    # (B, C_out, Ho*Wo) -> NCHW, pure row-major reshape, no transpose needed
    return out2d.reshape(B, C_out, Ho, Wo)


def conv_bn_relu_reference(x, w, b, gamma, beta, mean, var, stride, padding, eps):
    """Pure-JAX replica of the PyTorch forward (inference BN), for validation."""
    conv = jax.lax.conv_general_dilated(
        x.astype(jnp.float32), w.astype(jnp.float32),
        window_strides=(stride, stride),
        padding=((padding, padding), (padding, padding)),
        dimension_numbers=("NCHW", "OIHW", "NCHW"))
    conv = conv + b[None, :, None, None]
    y = (gamma[None, :, None, None]
         * (conv - mean[None, :, None, None])
         / jnp.sqrt(var + eps)[None, :, None, None]
         + beta[None, :, None, None])
    return jnp.maximum(y, 0.0)


if __name__ == "__main__":
    key = jax.random.PRNGKey(0)
    kx, kw, kb, kg, kbe, km, kv = jax.random.split(key, 7)

    B, C_in, H, W = 2, 4, 16, 16
    C_out, KH, KW = 8, 3, 3
    stride, padding = 1, 1
    eps = 1e-5

    x = jax.random.normal(kx, (B, C_in, H, W), dtype=jnp.float32)
    w = jax.random.normal(kw, (C_out, C_in, KH, KW), dtype=jnp.float32) * 0.1
    b = jax.random.normal(kb, (C_out,), dtype=jnp.float32) * 0.1
    gamma = jax.random.uniform(kg, (C_out,), jnp.float32, 0.5, 1.5)
    beta = jax.random.normal(kbe, (C_out,), dtype=jnp.float32) * 0.1
    running_mean = jax.random.normal(km, (C_out,), dtype=jnp.float32) * 0.1
    running_var = jax.random.uniform(kv, (C_out,), jnp.float32, 0.5, 1.5)

    out = conv_bn_relu_forward(x, w, b, gamma, beta, running_mean, running_var,
                               stride=stride, padding=padding, eps=eps)
    jax.block_until_ready(out)

    ref = conv_bn_relu_reference(x, w, b, gamma, beta, running_mean,
                                 running_var, stride, padding, eps)
    if not np.allclose(np.asarray(out), np.asarray(ref), rtol=1e-3, atol=1e-4):
        raise AssertionError("Pallas ConvBNReLU output does not match reference")

    print("KERNEL_OK")
</pallas_src>

<mosaic_0001>
module attributes {stable_mosaic.version = 11 : i64} {
  func.func @_gemm_bn_relu_kernel(%arg0: i32, %arg1: i32, %arg2: memref<1x36x256xf32, #tpu.memory_space<vmem>>, %arg3: memref<8x36xf32, #tpu.memory_space<vmem>>, %arg4: memref<8x1xf32, #tpu.memory_space<vmem>>, %arg5: memref<8x1xf32, #tpu.memory_space<vmem>>, %arg6: memref<1x8x256xf32, #tpu.memory_space<vmem>>) attributes {dimension_semantics = [#tpu.dimension_semantics<parallel>, #tpu.dimension_semantics<parallel>], iteration_bounds = array<i64: 2, 1>, scalar_prefetch = 0 : i64, scratch_operands = 0 : i64, tpu.core_type = #tpu.core_type<tc>, window_params = [{transform_indices = @transform_0, window_bounds = array<i64: 1, 36, 256>}, {pipeline_mode = #tpu.pipeline_mode<synchronous>, transform_indices = @transform_1, window_bounds = array<i64: 8, 36>}, {pipeline_mode = #tpu.pipeline_mode<synchronous>, transform_indices = @transform_2, window_bounds = array<i64: 8, 1>}, {pipeline_mode = #tpu.pipeline_mode<synchronous>, transform_indices = @transform_3, window_bounds = array<i64: 8, 1>}, {transform_indices = @transform_4, window_bounds = array<i64: 1, 8, 256>}]} {
    %c0 = arith.constant 0 : index
    %c0_0 = arith.constant 0 : index
    %0 = vector.load %arg3[%c0, %c0_0] : memref<8x36xf32, #tpu.memory_space<vmem>>, vector<8x36xf32>
    %c0_1 = arith.constant 0 : index
    %c0_2 = arith.constant 0 : index
    %c0_3 = arith.constant 0 : index
    %1 = vector.load %arg2[%c0_1, %c0_2, %c0_3] : memref<1x36x256xf32, #tpu.memory_space<vmem>>, vector<1x36x256xf32>
    %2 = vector.shape_cast %1 : vector<1x36x256xf32> to vector<36x256xf32>
    %cst = arith.constant dense<0.000000e+00> : vector<8x256xf32>
    %3 = tpu.matmul %0, %2, %cst {dimension_numbers = #tpu.dot_dimension_numbers<[1], [0], [0], [1], [0, 0, 1, 1], [], []>} : vector<8x36xf32>, vector<36x256xf32>, vector<8x256xf32> -> vector<8x256xf32>
    %c0_4 = arith.constant 0 : index
    %c0_5 = arith.constant 0 : index
    %4 = vector.load %arg4[%c0_4, %c0_5] : memref<8x1xf32, #tpu.memory_space<vmem>>, vector<8x1xf32>
    %5 = vector.broadcast %4 : vector<8x1xf32> to vector<8x256xf32>
    %6 = arith.mulf %3, %5 : vector<8x256xf32>
    %c0_6 = arith.constant 0 : index
    %c0_7 = arith.constant 0 : index
    %7 = vector.load %arg5[%c0_6, %c0_7] : memref<8x1xf32, #tpu.memory_space<vmem>>, vector<8x1xf32>
    %8 = vector.broadcast %7 : vector<8x1xf32> to vector<8x256xf32>
    %9 = arith.addf %6, %8 : vector<8x256xf32>
    %cst_8 = arith.constant 0.000000e+00 : f32
    %10 = vector.broadcast %cst_8 : f32 to vector<8x256xf32>
    %11 = arith.maximumf %9, %10 : vector<8x256xf32>
    %c0_9 = arith.constant 0 : index
    %c0_10 = arith.constant 0 : index
    %c0_11 = arith.constant 0 : index
    %12 = vector.load %arg6[%c0_9, %c0_10, %c0_11] : memref<1x8x256xf32, #tpu.memory_space<vmem>>, vector<1x8x256xf32>
    %13 = vector.shape_cast %12 : vector<1x8x256xf32> to vector<8x256xf32>
    %14 = vector.shape_cast %11 : vector<8x256xf32> to vector<1x8x256xf32>
    tpu.vector_store %arg6[%c0_9, %c0_10, %c0_11], %14 {strides = array<i32>} : memref<1x8x256xf32, #tpu.memory_space<vmem>>, vector<1x8x256xf32>,
    return
  }
  func.func @transform_0(%arg0: i32, %arg1: i32) -> (i32, i32, i32) {
    %c0_i32 = arith.constant 0 : i32
    %c0_i32_0 = arith.constant 0 : i32
    return %arg0, %c0_i32, %arg1 : i32, i32, i32
  }
  func.func @transform_1(%arg0: i32, %arg1: i32) -> (i32, i32) {
    %c0_i32 = arith.constant 0 : i32
    %c0_i32_0 = arith.constant 0 : i32
    %c0_i32_1 = arith.constant 0 : i32
    return %c0_i32, %c0_i32_0 : i32, i32
  }
  func.func @transform_2(%arg0: i32, %arg1: i32) -> (i32, i32) {
    %c0_i32 = arith.constant 0 : i32
    %c0_i32_0 = arith.constant 0 : i32
    %c0_i32_1 = arith.constant 0 : i32
    return %c0_i32, %c0_i32_0 : i32, i32
  }
  func.func @transform_3(%arg0: i32, %arg1: i32) -> (i32, i32) {
    %c0_i32 = arith.constant 0 : i32
    %c0_i32_0 = arith.constant 0 : i32
    %c0_i32_1 = arith.constant 0 : i32
    return %c0_i32, %c0_i32_0 : i32, i32
  }
  func.func @transform_4(%arg0: i32, %arg1: i32) -> (i32, i32, i32) {
    %c0_i32 = arith.constant 0 : i32
    %c0_i32_0 = arith.constant 0 : i32
    return %arg0, %c0_i32, %arg1 : i32, i32, i32
  }
}

</mosaic_0001>

<llo_original>
// kernel: tpu_custom_call.1
$region0: #{tpu_custom_call.1}
  #allocation0 [shape = 'u32[]', space=smem, size = 0x4, offset = 0x4, fixed_abs, tag = 'smem constant byte address 0x4 - core index']
  #allocation1 [shape = 'u32[144,128]{1,0:T(1,128)}', space=vmem, size = 0x12000, scoped, tag = 'internal scratch']
  %s0 = inlined_call_operand.vmem [shape: f32[2,36,256], index: 0, kind: input, shape index: {}]
  %s1 = inlined_call_operand.vmem [shape: f32[8,36], index: 1, kind: input, shape index: {}]
  %s2 = inlined_call_operand.vmem [shape: f32[8,1], index: 2, kind: input, shape index: {}]
  %s3 = inlined_call_operand.vmem [shape: f32[8,1], index: 3, kind: input, shape index: {}]
  %s4 = inlined_call_operand.hbm [shape: f32[2,8,256], index: 4, kind: output, shape index: {}]
  %s5 = sld [smem:[#allocation0]]
  $region49: #{tpu_custom_call.1} parent=0
    _
  %s7 = ssub.s32 1, %s5
  %s8 = scalar_select 0, %s7, %s5
  $region1: #{tpu_custom_call.1} parent=0
    #allocation2 [shape = 'u8[16384]{0}', space=vmem, size = 0x4000, scoped, tag = 'output window, operand 0']
    #allocation3 [shape = 's32[2]{0}', space=sflag, size = 0x8, scoped, tag = 'scoped memory for tpu_custom_call.1']
    %9 = vsyncpa [#allocation3], 0
    %s10 = scalar_lea.sflag [#allocation3], 1
    %11 = vsyncpa %s10, 0
    loop: start=0, step=1, limit=4
    $region2: #{tpu_custom_call.1} parent=1 // loop_pre_header
      _
    $region3: #{tpu_custom_call.1} parent=1 // loop_header
      %s13 = sphi 0, %s17
      %p14 = scmp.ge.s32.totalorder %s13, 4
      %s20 = sphi 0, %s32
      %s21 = sphi 0, %s28
      %s22 = sphi 0, %s20
      %s23 = sphi 0, %s21
      %s24 = sphi 0, %s22
      %s25 = sphi 0, %s23
      %s37 = sphi 0, %s39
      %s40 = sphi 0, %s37
      %s41 = sphi 0, %s40
      %s57 = sphi 0, %s41
      %s61 = sphi 0, %s61
      %s63 = sphi 0, %s61
      %s64 = sphi 0, %s63
      %s78 = sphi 0, %s64
      %s82 = sphi 0, %s82
      %s84 = sphi 0, %s82
      %s85 = sphi 0, %s84
      %s99 = sphi 0, %s85
      %s103 = sphi 0, %s103
      %s105 = sphi 0, %s103
      %s106 = sphi 0, %s105
      %s120 = sphi 0, %s106
      %s128 = sphi 0, %s130
      %s131 = sphi 0, %s128
      %s132 = sphi 0, %s131
      %s148 = sphi 0, %s132
    $region4: #{tpu_custom_call.1} parent=1 // loop_header_branch
      %16 = sbr.rel (%p14) target = $region8
    $region5: #{tpu_custom_call.1} parent=1 // loop_body
      %s18 = ssub.s32 %s13, 1
      %s19 = ssub.s32 %s13, 2
      %s26 = sadd.s32 1, %s21
      %p27 = scmp.ge.s32.totalorder %s26, 1
      %s28 = scalar_select %p27, 0, %s26
      %s29 = sadd.s32 1, %s20
      %s30 = scalar_select %p27, %s29, %s20
      %p31 = scmp.ge.s32.totalorder %s30, 2
      %s32 = scalar_select %p31, 0, %s30
      %s33 = ssub.s32 %s20, %s32
      %s34 = ssub.s32 %s21, %s28
      %s35 = sor.u32 %s33, %s34
      %p36 = scmp.eq.s32.totalorder %s35, 0
      %s38 = sadd.s32 %s37, 1
      %s39 = scalar_select %p36, %s37, %s38
      %p42 = pneg %p36
      %p43 = scmp.eq.s32.totalorder %s13, 1
      %p44 = por %p42, %p43
      %p45 = scmp.ne.s32.totalorder %s37, %s40
      %p46 = scmp.eq.s32.totalorder %s13, 0
      %p47 = por %p45, %p46
      %p48 = scmp.ne.s32.totalorder %s37, %s40
      %p49 = scmp.eq.s32.totalorder %s18, 1
      %p50 = por %p48, %p49
      %p51 = scmp.ne.s32.totalorder %s40, %s41
      %p52 = scmp.eq.s32.totalorder %s18, 0
      %p53 = por %p51, %p52
      %p54 = scmp.ne.s32.totalorder %s40, %s41
      %p55 = scmp.eq.s32.totalorder %s19, 1
      %p56 = por %p54, %p55
      %p58 = scmp.ne.s32.totalorder %s41, %s57
      %p59 = scmp.eq.s32.totalorder %s19, 0
      %p60 = por %p58, %p59
      %s62 = sadd.s32 %s61, 1
      %p65 = scmp.eq.s32.totalorder %s13, 1
      %p66 = scmp.ne.s32.totalorder %s61, %s63
      %p67 = scmp.eq.s32.totalorder %s13, 0
      %p68 = por %p66, %p67
      %p69 = scmp.ne.s32.totalorder %s61, %s63
      %p70 = scmp.eq.s32.totalorder %s18, 1
      %p71 = por %p69, %p70
      %p72 = scmp.ne.s32.totalorder %s63, %s64
      %p73 = scmp.eq.s32.totalorder %s18, 0
      %p74 = por %p72, %p73
      %p75 = scmp.ne.s32.totalorder %s63, %s64
      %p76 = scmp.eq.s32.totalorder %s19, 1
      %p77 = por %p75, %p76
      %p79 = scmp.ne.s32.totalorder %s64, %s78
      %p80 = scmp.eq.s32.totalorder %s19, 0
      %p81 = por %p79, %p80
      %s83 = sadd.s32 %s82, 1
      %p86 = scmp.eq.s32.totalorder %s13, 1
      %p87 = scmp.ne.s32.totalorder %s82, %s84
      %p88 = scmp.eq.s32.totalorder %s13, 0
      %p89 = por %p87, %p88
      %p90 = scmp.ne.s32.totalorder %s82, %s84
      %p91 = scmp.eq.s32.totalorder %s18, 1
      %p92 = por %p90, %p91
      %p93 = scmp.ne.s32.totalorder %s84, %s85
      %p94 = scmp.eq.s32.totalorder %s18, 0
      %p95 = por %p93, %p94
      %p96 = scmp.ne.s32.totalorder %s84, %s85
      %p97 = scmp.eq.s32.totalorder %s19, 1
      %p98 = por %p96, %p97
      %p100 = scmp.ne.s32.totalorder %s85, %s99
      %p101 = scmp.eq.s32.totalorder %s19, 0
      %p102 = por %p100, %p101
      %s104 = sadd.s32 %s103, 1
      %p107 = scmp.eq.s32.totalorder %s13, 1
      %p108 = scmp.ne.s32.totalorder %s103, %s105
      %p109 = scmp.eq.s32.totalorder %s13, 0
      %p110 = por %p108, %p109
      %p111 = scmp.ne.s32.totalorder %s103, %s105
      %p112 = scmp.eq.s32.totalorder %s18, 1
      %p113 = por %p111, %p112
      %p114 = scmp.ne.s32.totalorder %s105, %s106
      %p115 = scmp.eq.s32.totalorder %s18, 0
      %p116 = por %p114, %p115
      %p117 = scmp.ne.s32.totalorder %s105, %s106
      %p118 = scmp.eq.s32.totalorder %s19, 1
      %p119 = por %p117, %p118
      %p121 = scmp.ne.s32.totalorder %s106, %s120
      %p122 = scmp.eq.s32.totalorder %s19, 0
      %p123 = por %p121, %p122
      %s124 = ssub.s32 %s20, %s32
      %s125 = ssub.s32 %s21, %s28
      %s126 = sor.u32 %s124, %s125
      %p127 = scmp.eq.s32.totalorder %s126, 0
      %s129 = sadd.s32 %s128, 1
      %s130 = scalar_select %p127, %s128, %s129
      %p133 = pneg %p127
      %p134 = scmp.eq.s32.totalorder %s13, 1
      %p135 = por %p133, %p134
      %p136 = scmp.ne.s32.totalorder %s128, %s131
      %p137 = scmp.eq.s32.totalorder %s13, 0
      %p138 = por %p136, %p137
      %p139 = scmp.ne.s32.totalorder %s128, %s131
      %p140 = scmp.eq.s32.totalorder %s18, 1
      %p141 = por %p139, %p140
      %p142 = scmp.ne.s32.totalorder %s131, %s132
      %p143 = scmp.eq.s32.totalorder %s18, 0
      %p144 = por %p142, %p143
      %p145 = scmp.ne.s32.totalorder %s131, %s132
      %p146 = scmp.eq.s32.totalorder %s19, 1
      %p147 = por %p145, %p146
      %p149 = scmp.ne.s32.totalorder %s132, %s148
      %p150 = scmp.eq.s32.totalorder %s19, 0
      %p151 = por %p149, %p150
      %p152 = scmp.le.s32.totalorder 1, %s13
      %p153 = scmp.lt.s32.totalorder %s13, 3
      %p154 = pnand %p152, %p153
      %p155 = pneg %p154
      // Predicated region
      $region9: #{tpu_custom_call.1} parent=5 // pred_check
        _
      $region10: #{tpu_custom_call.1} parent=5 // pred_check_branch
        %157 = sbr.rel (%p154) target = $region12
      $region11: #{tpu_custom_call.1} parent=5 // pred_region
        %s158 = ssub.s32 %s13, 1
        // Predicated region
        $region13: #{tpu_custom_call.1} parent=11 // pred_check
          %p159 = pneg %p74
        $region14: #{tpu_custom_call.1} parent=11 // pred_check_branch
          %161 = sbr.rel (%p159) target = $region16
        $region15: #{tpu_custom_call.1} parent=11 // pred_region
          _
        $region16: #{tpu_custom_call.1} parent=11 // pred_fallthru
          _
        // Predicated region
        $region17: #{tpu_custom_call.1} parent=11 // pred_check
          %p162 = pneg %p95
        $region18: #{tpu_custom_call.1} parent=11 // pred_check_branch
          %164 = sbr.rel (%p162) target = $region20
        $region19: #{tpu_custom_call.1} parent=11 // pred_region
          _
        $region20: #{tpu_custom_call.1} parent=11 // pred_fallthru
          _
        // Predicated region
        $region21: #{tpu_custom_call.1} parent=11 // pred_check
          %p165 = pneg %p116
        $region22: #{tpu_custom_call.1} parent=11 // pred_check_branch
          %167 = sbr.rel (%p165) target = $region24
        $region23: #{tpu_custom_call.1} parent=11 // pred_region
          _
        $region24: #{tpu_custom_call.1} parent=11 // pred_fallthru
          _
      $region12: #{tpu_custom_call.1} parent=5 // pred_fallthru
        _
      %p168 = scmp.lt.s32.totalorder %s13, 2
      // Predicated region
      $region25: #{tpu_custom_call.1} parent=5 // pred_check
        %p169 = pneg %p168
      $region26: #{tpu_custom_call.1} parent=5 // pred_check_branch
        %171 = sbr.rel (%p169) target = $region28
      $region27: #{tpu_custom_call.1} parent=5 // pred_region
        // Predicated region
        $region29: #{tpu_custom_call.1} parent=27 // pred_check
          %p172 = pneg %p47
        $region30: #{tpu_custom_call.1} parent=27 // pred_check_branch
          %174 = sbr.rel (%p172) target = $region32
        $region31: #{tpu_custom_call.1} parent=27 // pred_region
          %s175 = smul.u32 2, %s21
          %p176 = scmp.lt.s32.totalorder %s20, 1
          %s177 = scalar_select %p176, %s20, 1
          %p178 = scmp.lt.s32.totalorder %s175, 1
          %s179 = scalar_select %p178, %s175, 1
          %s180 = smul.addr %s177, 10
          %s181 = sadd.s32 %s179, %s180
          %s182 = smul.addr %s181, 8
          %s183 = scalar_lea.vmem %s0, %s182
          %s184 = smul.u32 2, %s21
        $region32: #{tpu_custom_call.1} parent=27 // pred_fallthru
          _
      $region28: #{tpu_custom_call.1} parent=5 // pred_fallthru
        _
      %p185 = scmp.le.s32.totalorder 1, %s13
      %p186 = scmp.lt.s32.totalorder %s13, 3
      %p187 = pnand %p185, %p186
      %p188 = pneg %p187
      // Predicated region
      $region33: #{tpu_custom_call.1} parent=5 // pred_check
        _
      $region34: #{tpu_custom_call.1} parent=5 // pred_check_branch
        %190 = sbr.rel (%p187) target = $region36
      $region35: #{tpu_custom_call.1} parent=5 // pred_region
        %s191 = ssub.s32 %s13, 1
        %s192 = smul.u32 2, %s23
        %p193 = scmp.lt.s32.totalorder %s22, 1
        %s194 = scalar_select %p193, %s22, 1
        %p195 = scmp.lt.s32.totalorder %s192, 1
        %s196 = scalar_select %p195, %s192, 1
        %s197 = smul.addr %s194, 10
        %s198 = sadd.s32 %s196, %s197
        %s199 = smul.addr %s198, 8
        %s200 = scalar_lea.vmem %s0, %s199
        %p201 = pneg %p53
        %p202 = pneg %p50
        %p203 = pneg %p74
        %p204 = pneg %p71
        %p205 = pneg %p95
        %p206 = pneg %p92
        %p207 = pneg %p116
        %p208 = pneg %p113
        %p209 = pneg %p144
        %p210 = pneg %p141
        %s211 = sand.u32 %s131, 1
        %s212 = scalar_lea.sflag [#allocation3], %s211
        %s213 = sand.u32 %s131, 1
        %s214 = smul.addr %s213, 16
        %s215 = scalar_lea.vmem [#allocation2], %s214
        %s216 = smul.u32 2, %s23
        %p217 = scmp.lt.s32.totalorder %s22, 1
        %s218 = scalar_select %p217, %s22, 1
        %p219 = scmp.lt.s32.totalorder %s216, 1
        %s220 = scalar_select %p219, %s216, 1
        %s221 = smul.addr %s218, 10
        %s222 = sadd.s32 %s220, %s221
        %s223 = smul.addr %s222, 8
        %s224 = scalar_lea.vmem %s0, %s223
        %s225 = smul.u32 2, %s23
        %s226 = smul.u32 2, %s23
        %v227 = vld [vmem:[%s1] sm:$0xff]
        %v228 = vld [vmem:[%s224] sm:$0xff]
        %v229 = vld [vmem:[%s224 + $0x8] sm:$0xff]
        %v230 = vld [vmem:[%s224 + $0x10] sm:$0xff]
        %v231 = vld [vmem:[%s224 + $0x18] sm:$0xff]
        %v232 = vld [vmem:[%s224 + $0x20] sm:$0xff]
        %v233 = vld [vmem:[%s224 + $0x28] sm:$0xff]
        %v234 = vld [vmem:[%s224 + $0x30] sm:$0xff]
        %v235 = vld [vmem:[%s224 + $0x38] sm:$0xff]
        %v236 = vld [vmem:[%s224 + $0x40] sm:$0xf]
        %v237 = vld [vmem:[%s224 + $0x48] sm:$0xf]
        %vm238 = vcmask 293888
        %v240 = vsel %vm238, %v227, 0
        %vm242 = vcmask 1043456
        %v244 = vsel %vm242, %v236, 0
        %v247 = vsel %vm242, %v237, 0
        %249 = vmatprep.subr.mxu0 %v229
        %250 = vmatpush1.msra.mxu0 %v228
        %251 = vmatprep.subr.mxu0 %v231
        %252 = vmatpush1.msra.mxu0 %v230
        %253 = vmatprep.subr.mxu0 %v233
        %254 = vmatpush1.msra.mxu0 %v232
        %255 = vmatprep.subr.mxu0 %v235
        %256 = vmatpush1.msra.mxu0 %v234
        %257 = vmatprep.subr.mxu0 %v247
        %258 = vmatpush1.msra.mxu0 %v244
        %259 = vmatprep.subr.mxu0 0.0
        %260 = vmatpush1.msra.mxu0 0.0
        %261 = vmatprep.subr.mxu0 0.0
        %262 = vmatpush1.msra.mxu0 0.0
        %263 = vmatprep.subr.mxu0 0.0
        %264 = vmatpush1.msra.mxu0 0.0
        %265 = vmatprep.subr.mxu0 0.0
        %266 = vmatpush1.msra.mxu0 0.0
        %267 = vmatprep.subr.mxu0 0.0
        %268 = vmatpush1.msra.mxu0 0.0
        %269 = vmatprep.subr.mxu0 0.0
        %270 = vmatpush1.msra.mxu0 0.0
        %271 = vmatprep.subr.mxu0 0.0
        %272 = vmatpush1.msra.mxu0 0.0
        %273 = vmatprep.subr.mxu0 0.0
        %274 = vmatpush1.msra.mxu0 0.0
        %275 = vmatprep.subr.mxu0 0.0
        %276 = vmatpush1.msra.mxu0 0.0
        %277 = vmatprep.subr.mxu0 0.0
        %278 = vmatpush1.msra.mxu0 0.0
        %279 = vmatprep.subr.mxu0 0.0
        %280 = vmatpush1.msra.mxu0 0.0
        %281 = vmatprep.subr.mxu0 0.0
        %282 = vmatpush1.msra.mxu0 0.0
        %283 = vmatprep.subr.mxu0 0.0
        %284 = vmatpush1.msra.mxu0 0.0
        %285 = vmatprep.subr.mxu0 0.0
        %286 = vmatpush1.msra.mxu0 0.0
        %287 = vmatprep.subr.mxu0 0.0
        %288 = vmatpush1.msra.mxu0 0.0
        %289 = vmatprep.subr.mxu0 0.0
        %290 = vmatpush1.msra.mxu0 0.0
        %291 = vmatprep.subr.mxu0 0.0
        %292 = vmatpush1.msra.mxu0 0.0
        %293 = vmatprep.subr.mxu0 0.0
        %294 = vmatpush1.msra.mxu0 0.0
        %295 = vmatprep.subr.mxu0 0.0
        %296 = vmatpush1.msra.mxu0 0.0
        %297 = vmatprep.subr.mxu0 0.0
        %298 = vmatpush1.msra.mxu0 0.0
        %299 = vmatprep.subr.mxu0 0.0
        %300 = vmatpush1.msra.mxu0 0.0
        %301 = vmatprep.subr.mxu0 0.0
        %302 = vmatpush1.msra.mxu0 0.0
        %303 = vmatprep.subr.mxu0 0.0
        %304 = vmatpush1.msra.mxu0 0.0
        %305 = vmatprep.subr.mxu0 0.0
        %306 = vmatpush1.msra.mxu0 0.0
        %307 = vmatprep.subr.mxu0 0.0
        %308 = vmatpush1.msra.mxu0 0.0
        %309 = vmatprep.subr.mxu0 0.0
        %310 = vmatpush1.msra.mxu0 0.0
        %311 = vmatprep.subr.mxu0 0.0
        %312 = vmatpush1.msra.mxu0 0.0
        %313 = vmatprep.mubr.f32.mxu0 0.0
        %314 = vmatmul.mubr.f32.gmra.mrb[0].mxu0 %v240
        %v315 = vpop.f32.mrb[0].mxu0
        %v316 = vadd.f32 0.0, %v315
        %v317 = vpop.f32.mrb[0].mxu0
        %v318 = vadd.f32 0.0, %v317
        %319 = vdwg.mxu0
        %v320 = vld [vmem:[%s2] sm:$0xff]
        %322 = vset.pattern.permute.xlu0 0
        %323 = vperm.xlu0 %322, %v320
        %v324 = vpop.permute.xlu0 %323
        %v326 = vmul.f32 %v316, %v324
        %v327 = vmul.f32 %v318, %v324
        %v328 = vld [vmem:[%s3] sm:$0xff]
        %330 = vset.pattern.permute.xlu0 0
        %331 = vperm.xlu0 %330, %v328
        %v332 = vpop.permute.xlu0 %331
        %v334 = vadd.f32 %v326, %v332
        %v335 = vadd.f32 %v327, %v332
        %v336 = vmax.f32 %v334, 0.0
        %v337 = vmax.f32 %v335, 0.0
        %338 = vst [vmem:[%s215] sm:$0xff] %v336
        %339 = vst [vmem:[%s215 + $0x8] sm:$0xff] %v337
        %s340 = sand.u32 %s131, 1
        %s341 = scalar_lea.sflag [#allocation3], %s340
        %s342 = sand.u32 %s131, 1
        %s343 = smul.addr %s342, 16
        %s344 = scalar_lea.vmem [#allocation2], %s343
        // Predicated region
        $region37: #{tpu_custom_call.1} parent=35 // pred_check
          %p345 = pneg %p141
        $region38: #{tpu_custom_call.1} parent=35 // pred_check_branch
          %347 = sbr.rel (%p345) target = $region40
        $region39: #{tpu_custom_call.1} parent=35 // pred_region
          %s348 = smul.u32 2, %s23
          %s350 = ssub.s32 256, 256
          %351 = vsyncadd %s341, %s350
          %s352 = smul.addr %s22, 2
          %s353 = sadd.s32 %s348, %s352
          %s354 = smul.addr %s353, 128
          %s355 = scalar_lea.hbm %s4, %s354
          %s357 = sshll.u32 %s344, 4
          %s358 = int_to_ptr.vmem [resolvable:$true] %s357
          %360 = dma.vmem_to_hbm [thread:$0]  %s358, 256, %s355, %s341
        $region40: #{tpu_custom_call.1} parent=35 // pred_fallthru
          _
      $region36: #{tpu_custom_call.1} parent=5 // pred_fallthru
        _
      %p361 = scmp.le.s32.totalorder 2, %s13
      // Predicated region
      $region41: #{tpu_custom_call.1} parent=5 // pred_check
        %p362 = pneg %p361
      $region42: #{tpu_custom_call.1} parent=5 // pred_check_branch
        %364 = sbr.rel (%p362) target = $region44
      $region43: #{tpu_custom_call.1} parent=5 // pred_region
        %s365 = ssub.s32 %s13, 2
        // Predicated region
        $region45: #{tpu_custom_call.1} parent=43 // pred_check
          %p366 = pneg %p147
        $region46: #{tpu_custom_call.1} parent=43 // pred_check_branch
          %368 = sbr.rel (%p366) target = $region48
        $region47: #{tpu_custom_call.1} parent=43 // pred_region
          %s369 = sand.u32 %s132, 1
          %s370 = scalar_lea.sflag [#allocation3], %s369
          %s371 = sand.u32 %s132, 1
          %s372 = smul.addr %s371, 16
          %s373 = scalar_lea.vmem [#allocation2], %s372
          %374 = dma.done %s370, 256
        $region48: #{tpu_custom_call.1} parent=43 // pred_fallthru
          _
      $region44: #{tpu_custom_call.1} parent=5 // pred_fallthru
        _
    $region6: #{tpu_custom_call.1} parent=1 // loop_footer
      %s17 = sadd.s32 1, %s13
    $region7: #{tpu_custom_call.1} parent=1 // loop_footer_branch
      %12 = sbr.rel target = $region3
    $region8: #{tpu_custom_call.1} parent=1 // loop_exit
      _
    %375 = vsyncpa [#allocation3], 1
    %s376 = scalar_lea.sflag [#allocation3], 1
    %377 = vsyncpa %s376, 1

</llo_original>
